<compile_context>
chip_gen: v7x
topology: tpu7x:2x2x1
jax: 0.10.0
libtpu: 0.0.40
codegen_flags: <defaults>
</compile_context>

<pallas_src>
import functools

import jax
import jax.numpy as jnp
from jax.experimental import pallas as pl
from jax.experimental.pallas import tpu as pltpu


def _fused_conv_bn_relu_kernel(x_ref, w_ref, b_ref, g_ref, beta_ref, o_ref, *, m, eps):
    """Fused conv (one MXU matmul over im2col) + training-mode BN + ReLU.

    x_ref    : [M, K]      im2col patches (compute dtype), K = KH*KW*Cin, M = N*OH*OW
    w_ref    : [K, CPAD]   flattened weights, Cout zero-padded to a 128-lane multiple
    b_ref    : [1, CPAD]   conv bias (f32)
    g_ref    : [1, CPAD]   BN gamma  (f32)
    beta_ref : [1, CPAD]   BN beta   (f32)
    o_ref    : [M, CPAD]   output    (compute dtype, lane-dense stores)
    """
    # Single MXU matmul with fp32 accumulation; conv output never leaves VMEM/vregs.
    y = jnp.dot(x_ref[...], w_ref[...], preferred_element_type=jnp.float32)
    y = y + b_ref[...]                                     # conv bias

    # Training-mode BatchNorm statistics: per channel (lane), over all M rows, in f32.
    inv_m = 1.0 / m
    mean = jnp.sum(y, axis=0, keepdims=True) * inv_m       # [1, CPAD]
    centered = y - mean
    var = jnp.sum(centered * centered, axis=0, keepdims=True) * inv_m  # biased variance
    scale = g_ref[...] * jax.lax.rsqrt(var + eps)          # padded lanes: gamma=0 -> 0

    # BN fold + ReLU, single lane-dense store in the (narrow) output dtype.
    o_ref[...] = jnp.maximum(centered * scale + beta_ref[...], 0.0).astype(o_ref.dtype)


@functools.partial(jax.jit, static_argnames=("stride", "padding", "eps", "compute_dtype"))
def conv2d_bn_act(x_nchw, w_oihw, bias, gamma, beta, *,
                  stride=(1, 1), padding=(1, 1), eps=1e-5, compute_dtype=jnp.bfloat16):
    N, Cin, H, W = x_nchw.shape
    Cout, Cin_w, KH, KW = w_oihw.shape
    assert Cin == Cin_w
    sh, sw = stride
    ph, pw = padding
    OH = (H + 2 * ph - KH) // sh + 1
    OW = (W + 2 * pw - KW) // sw + 1
    M = N * OH * OW
    K = KH * KW * Cin
    CPAD = ((Cout + 127) // 128) * 128                     # lane-dense output channels

    # ---- glue: NHWC, zero pad ('zeros' padding_mode), single cast, im2col pack ----
    # With small Cin the im2col slab is tiny (M*K*2 bytes) and lets the kernel run one
    # K-deep MXU matmul instead of KH*KW shallow ones with in-kernel relayout.
    x = jnp.transpose(x_nchw, (0, 2, 3, 1)).astype(compute_dtype)
    x = jnp.pad(x, ((0, 0), (ph, ph), (pw, pw), (0, 0)))
    patches = [x[:, dh:dh + (OH - 1) * sh + 1:sh, dw:dw + (OW - 1) * sw + 1:sw, :]
               for dh in range(KH) for dw in range(KW)]
    x_im2col = jnp.concatenate(patches, axis=-1).reshape(M, K)

    # Weight [Cout, Cin, KH, KW] -> [K, CPAD], matching the (dh, dw, cin) patch order.
    w_t = jnp.transpose(w_oihw, (2, 3, 1, 0)).reshape(K, Cout)
    w_t = jnp.pad(w_t, ((0, 0), (0, CPAD - Cout))).astype(compute_dtype)

    def _row(v):
        return jnp.pad(v.astype(jnp.float32), (0, CPAD - Cout)).reshape(1, CPAD)

    b_row, g_row, beta_row = _row(bias), _row(gamma), _row(beta)

    kernel = functools.partial(_fused_conv_bn_relu_kernel, m=M, eps=eps)

    # Single fused step: the whole problem fits comfortably in VMEM at these shapes.
    # TODO(synk): for real layer sizes, tile CPAD across a 'parallel' grid axis
    # (per-channel BN stats need no cross-tile reduction; engages both v7x TCs), and
    # if M must also be tiled, accumulate f32 sum/sumsq partials across an 'arbitrary'
    # M axis; size tiles against 64 MiB VMEM on v7x vs 128 MiB on v5e/v6e.
    y = pl.pallas_call(
        kernel,
        out_shape=jax.ShapeDtypeStruct((M, CPAD), compute_dtype),
        grid=(1,),
        in_specs=[
            pl.BlockSpec((M, K), lambda i: (0, 0)),
            pl.BlockSpec((K, CPAD), lambda i: (0, 0)),
            pl.BlockSpec((1, CPAD), lambda i: (0, 0)),
            pl.BlockSpec((1, CPAD), lambda i: (0, 0)),
            pl.BlockSpec((1, CPAD), lambda i: (0, 0)),
        ],
        out_specs=pl.BlockSpec((M, CPAD), lambda i: (0, 0)),
        compiler_params=pltpu.CompilerParams(
            dimension_semantics=("arbitrary",),
            vmem_limit_bytes=32 * 1024 * 1024),
    )(x_im2col, w_t, b_row, g_row, beta_row)

    out = y[:, :Cout].astype(x_nchw.dtype).reshape(N, OH, OW, Cout)
    return jnp.transpose(out, (0, 3, 1, 2))                # back to NCHW


def _reference(x, w, b, gamma, beta, *, stride, padding, eps=1e-5):
    conv = jax.lax.conv_general_dilated(
        x, w, window_strides=stride,
        padding=((padding[0], padding[0]), (padding[1], padding[1])),
        dimension_numbers=("NCHW", "OIHW", "NCHW")) + b.reshape(1, -1, 1, 1)
    mean = conv.mean(axis=(0, 2, 3), keepdims=True)
    var = conv.var(axis=(0, 2, 3), keepdims=True)          # biased, like BN normalization
    y = (conv - mean) * jax.lax.rsqrt(var + eps)
    y = y * gamma.reshape(1, -1, 1, 1) + beta.reshape(1, -1, 1, 1)
    return jnp.maximum(y, 0.0)


if __name__ == "__main__":
    # Module config: Conv2dBatchNormActivion(in_channels=4, out_channels=8,
    #                                        kernel_size=3, stride=1, padding=1)
    N, Cin, H, W = 2, 4, 16, 16
    Cout, KH, KW = 8, 3, 3
    stride, padding = (1, 1), (1, 1)

    key = jax.random.PRNGKey(0)
    kx, kwt, kb, kg, kbeta = jax.random.split(key, 5)

    x = jax.random.normal(kx, (N, Cin, H, W), dtype=jnp.float32)
    fan_in = Cin * KH * KW
    bound = 1.0 / float(fan_in) ** 0.5
    w_oihw = jax.random.uniform(kwt, (Cout, Cin, KH, KW), jnp.float32, -bound, bound)
    bias = jax.random.uniform(kb, (Cout,), jnp.float32, -bound, bound)
    gamma = 1.0 + 0.1 * jax.random.normal(kg, (Cout,), jnp.float32)
    beta = 0.1 * jax.random.normal(kbeta, (Cout,), jnp.float32)

    ref = _reference(x, w_oihw, bias, gamma, beta, stride=stride, padding=padding)

    # fp32 compute path: tight check of conv / BN / ReLU semantics.
    out_f32 = conv2d_bn_act(x, w_oihw, bias, gamma, beta, stride=stride,
                            padding=padding, compute_dtype=jnp.float32)
    out_f32 = jax.block_until_ready(out_f32)
    assert out_f32.shape == (N, Cout, H, W)
    assert jnp.allclose(out_f32, ref, atol=2e-3, rtol=2e-3), "fp32 mismatch vs reference"

    # Default bf16 path (bf16 MXU inputs + bf16 output, fp32 accumulation & BN math):
    # batch stats are computed on bf16-rounded activations -> looser tolerance.
    out_bf16 = conv2d_bn_act(x, w_oihw, bias, gamma, beta, stride=stride, padding=padding)
    out_bf16 = jax.block_until_ready(out_bf16)
    assert out_bf16.shape == (N, Cout, H, W)
    assert jnp.allclose(out_bf16, ref, atol=5e-2, rtol=5e-2), "bf16 mismatch vs reference"

    print("KERNEL_OK")
</pallas_src>

<mosaic_0001>
module attributes {stable_mosaic.version = 11 : i64} {
  func.func @_fused_conv_bn_relu_kernel(%arg0: i32, %arg1: memref<512x36xf32, #tpu.memory_space<vmem>>, %arg2: memref<36x128xf32, #tpu.memory_space<vmem>>, %arg3: memref<1x128xf32, #tpu.memory_space<vmem>>, %arg4: memref<1x128xf32, #tpu.memory_space<vmem>>, %arg5: memref<1x128xf32, #tpu.memory_space<vmem>>, %arg6: memref<512x128xf32, #tpu.memory_space<vmem>>) attributes {dimension_semantics = [#tpu.dimension_semantics<arbitrary>], iteration_bounds = array<i64: 1>, scalar_prefetch = 0 : i64, scratch_operands = 0 : i64, tpu.core_type = #tpu.core_type<tc>, window_params = [{pipeline_mode = #tpu.pipeline_mode<synchronous>, transform_indices = @transform_0, window_bounds = array<i64: 512, 36>}, {pipeline_mode = #tpu.pipeline_mode<synchronous>, transform_indices = @transform_1, window_bounds = array<i64: 36, 128>}, {pipeline_mode = #tpu.pipeline_mode<synchronous>, transform_indices = @transform_2, window_bounds = array<i64: 1, 128>}, {pipeline_mode = #tpu.pipeline_mode<synchronous>, transform_indices = @transform_3, window_bounds = array<i64: 1, 128>}, {pipeline_mode = #tpu.pipeline_mode<synchronous>, transform_indices = @transform_4, window_bounds = array<i64: 1, 128>}, {pipeline_mode = #tpu.pipeline_mode<synchronous>, transform_indices = @transform_5, window_bounds = array<i64: 512, 128>}]} {
    %c0 = arith.constant 0 : index
    %c0_0 = arith.constant 0 : index
    %0 = vector.load %arg1[%c0, %c0_0] : memref<512x36xf32, #tpu.memory_space<vmem>>, vector<512x36xf32>
    %c0_1 = arith.constant 0 : index
    %c0_2 = arith.constant 0 : index
    %1 = vector.load %arg2[%c0_1, %c0_2] : memref<36x128xf32, #tpu.memory_space<vmem>>, vector<36x128xf32>
    %cst = arith.constant dense<0.000000e+00> : vector<512x128xf32>
    %2 = tpu.matmul %0, %1, %cst {dimension_numbers = #tpu.dot_dimension_numbers<[1], [0], [0], [1], [0, 0, 1, 1], [], []>} : vector<512x36xf32>, vector<36x128xf32>, vector<512x128xf32> -> vector<512x128xf32>
    %c0_3 = arith.constant 0 : index
    %c0_4 = arith.constant 0 : index
    %3 = vector.load %arg3[%c0_3, %c0_4] : memref<1x128xf32, #tpu.memory_space<vmem>>, vector<1x128xf32>
    %4 = vector.broadcast %3 : vector<1x128xf32> to vector<512x128xf32>
    %5 = arith.addf %2, %4 : vector<512x128xf32>
    %cst_5 = arith.constant dense<0.000000e+00> : vector<128xf32>
    %6 = vector.multi_reduction <add>, %5, %cst_5 [0] : vector<512x128xf32> to vector<128xf32>
    %7 = vector.shape_cast %6 : vector<128xf32> to vector<1x128xf32>
    %cst_6 = arith.constant 0.001953125 : f32
    %8 = vector.broadcast %cst_6 : f32 to vector<1x128xf32>
    %9 = arith.mulf %7, %8 : vector<1x128xf32>
    %10 = vector.broadcast %9 : vector<1x128xf32> to vector<512x128xf32>
    %11 = arith.subf %5, %10 : vector<512x128xf32>
    %12 = arith.mulf %11, %11 : vector<512x128xf32>
    %cst_7 = arith.constant dense<0.000000e+00> : vector<128xf32>
    %13 = vector.multi_reduction <add>, %12, %cst_7 [0] : vector<512x128xf32> to vector<128xf32>
    %14 = vector.shape_cast %13 : vector<128xf32> to vector<1x128xf32>
    %cst_8 = arith.constant 0.001953125 : f32
    %15 = vector.broadcast %cst_8 : f32 to vector<1x128xf32>
    %16 = arith.mulf %14, %15 : vector<1x128xf32>
    %c0_9 = arith.constant 0 : index
    %c0_10 = arith.constant 0 : index
    %17 = vector.load %arg4[%c0_9, %c0_10] : memref<1x128xf32, #tpu.memory_space<vmem>>, vector<1x128xf32>
    %cst_11 = arith.constant 9.99999974E-6 : f32
    %18 = vector.broadcast %cst_11 : f32 to vector<1x128xf32>
    %19 = arith.addf %16, %18 : vector<1x128xf32>
    %20 = math.rsqrt %19 : vector<1x128xf32>
    %21 = arith.mulf %17, %20 : vector<1x128xf32>
    %22 = vector.broadcast %21 : vector<1x128xf32> to vector<512x128xf32>
    %23 = arith.mulf %11, %22 : vector<512x128xf32>
    %c0_12 = arith.constant 0 : index
    %c0_13 = arith.constant 0 : index
    %24 = vector.load %arg5[%c0_12, %c0_13] : memref<1x128xf32, #tpu.memory_space<vmem>>, vector<1x128xf32>
    %25 = vector.broadcast %24 : vector<1x128xf32> to vector<512x128xf32>
    %26 = arith.addf %23, %25 : vector<512x128xf32>
    %cst_14 = arith.constant 0.000000e+00 : f32
    %27 = vector.broadcast %cst_14 : f32 to vector<512x128xf32>
    %28 = arith.maximumf %26, %27 : vector<512x128xf32>
    %c0_15 = arith.constant 0 : index
    %c0_16 = arith.constant 0 : index
    %29 = vector.load %arg6[%c0_15, %c0_16] : memref<512x128xf32, #tpu.memory_space<vmem>>, vector<512x128xf32>
    tpu.vector_store %arg6[%c0_15, %c0_16], %28 {strides = array<i32>} : memref<512x128xf32, #tpu.memory_space<vmem>>, vector<512x128xf32>,
    return
  }
  func.func @transform_0(%arg0: i32) -> (i32, i32) {
    %c0_i32 = arith.constant 0 : i32
    %c0_i32_0 = arith.constant 0 : i32
    %c0_i32_1 = arith.constant 0 : i32
    return %c0_i32, %c0_i32_0 : i32, i32
  }
  func.func @transform_1(%arg0: i32) -> (i32, i32) {
    %c0_i32 = arith.constant 0 : i32
    %c0_i32_0 = arith.constant 0 : i32
    %c0_i32_1 = arith.constant 0 : i32
    return %c0_i32, %c0_i32_0 : i32, i32
  }
  func.func @transform_2(%arg0: i32) -> (i32, i32) {
    %c0_i32 = arith.constant 0 : i32
    %c0_i32_0 = arith.constant 0 : i32
    %c0_i32_1 = arith.constant 0 : i32
    return %c0_i32, %c0_i32_0 : i32, i32
  }
  func.func @transform_3(%arg0: i32) -> (i32, i32) {
    %c0_i32 = arith.constant 0 : i32
    %c0_i32_0 = arith.constant 0 : i32
    %c0_i32_1 = arith.constant 0 : i32
    return %c0_i32, %c0_i32_0 : i32, i32
  }
  func.func @transform_4(%arg0: i32) -> (i32, i32) {
    %c0_i32 = arith.constant 0 : i32
    %c0_i32_0 = arith.constant 0 : i32
    %c0_i32_1 = arith.constant 0 : i32
    return %c0_i32, %c0_i32_0 : i32, i32
  }
  func.func @transform_5(%arg0: i32) -> (i32, i32) {
    %c0_i32 = arith.constant 0 : i32
    %c0_i32_0 = arith.constant 0 : i32
    %c0_i32_1 = arith.constant 0 : i32
    return %c0_i32, %c0_i32_0 : i32, i32
  }
}

</mosaic_0001>

<llo_original>
// kernel: conv2d_bn_act.1
$region0: #{conv2d_bn_act.1}
  #allocation0 [shape = 'u32[]', space=smem, size = 0x4, offset = 0x4, fixed_abs, tag = 'smem constant byte address 0x4 - core index']
  #allocation1 [shape = 'u32[144,128]{1,0:T(1,128)}', space=vmem, size = 0x12000, scoped, tag = 'internal scratch']
  %s0 = inlined_call_operand.vmem [shape: f32[512,36], index: 0, kind: input, shape index: {}]
  %s1 = inlined_call_operand.vmem [shape: f32[36,128], index: 1, kind: input, shape index: {}]
  %s2 = inlined_call_operand.vmem [shape: f32[1,128], index: 2, kind: input, shape index: {}]
  %s3 = inlined_call_operand.vmem [shape: f32[1,128], index: 3, kind: input, shape index: {}]
  %s4 = inlined_call_operand.vmem [shape: f32[1,128], index: 4, kind: input, shape index: {}]
  %s5 = inlined_call_operand.vmem [shape: f32[512,128], index: 5, kind: output, shape index: {}]
  %s6 = sld [smem:[#allocation0]]
  $region30: #{conv2d_bn_act.1} parent=0
    _
  %s8 = ssub.s32 1, %s6
  %s9 = scalar_select 0, %s8, %s6
  // Predicated region
  $region2: #{conv2d_bn_act.1} parent=0 // pred_check
    _
  $region3: #{conv2d_bn_act.1} parent=0 // pred_check_branch
    %11 = sbr.rel (0) target = $region5
  $region4: #{conv2d_bn_act.1} parent=0 // pred_region
    _
  $region5: #{conv2d_bn_act.1} parent=0 // pred_fallthru
    _
  // Predicated region
  $region6: #{conv2d_bn_act.1} parent=0 // pred_check
    _
  $region7: #{conv2d_bn_act.1} parent=0 // pred_check_branch
    %13 = sbr.rel (0) target = $region9
  $region8: #{conv2d_bn_act.1} parent=0 // pred_region
    _
  $region9: #{conv2d_bn_act.1} parent=0 // pred_fallthru
    _
  // Predicated region
  $region10: #{conv2d_bn_act.1} parent=0 // pred_check
    _
  $region11: #{conv2d_bn_act.1} parent=0 // pred_check_branch
    %15 = sbr.rel (0) target = $region13
  $region12: #{conv2d_bn_act.1} parent=0 // pred_region
    _
  $region13: #{conv2d_bn_act.1} parent=0 // pred_fallthru
    _
  // Predicated region
  $region14: #{conv2d_bn_act.1} parent=0 // pred_check
    _
  $region15: #{conv2d_bn_act.1} parent=0 // pred_check_branch
    %17 = sbr.rel (0) target = $region17
  $region16: #{conv2d_bn_act.1} parent=0 // pred_region
    _
  $region17: #{conv2d_bn_act.1} parent=0 // pred_fallthru
    _
  // Predicated region
  $region18: #{conv2d_bn_act.1} parent=0 // pred_check
    _
  $region19: #{conv2d_bn_act.1} parent=0 // pred_check_branch
    %19 = sbr.rel (0) target = $region21
  $region20: #{conv2d_bn_act.1} parent=0 // pred_region
    _
  $region21: #{conv2d_bn_act.1} parent=0 // pred_fallthru
    _
  %v20 = vld [vmem:[%s0] sm:$0xff]
  %v21 = vld [vmem:[%s0 + $0x8] sm:$0xff]
  %v22 = vld [vmem:[%s0 + $0x10] sm:$0xff]
  %v23 = vld [vmem:[%s0 + $0x18] sm:$0xff]
  %v24 = vld [vmem:[%s0 + $0x20] sm:$0xff]
  %v25 = vld [vmem:[%s0 + $0x28] sm:$0xff]
  %v26 = vld [vmem:[%s0 + $0x30] sm:$0xff]
  %v27 = vld [vmem:[%s0 + $0x38] sm:$0xff]
  %v28 = vld [vmem:[%s0 + $0x40] sm:$0xff]
  %v29 = vld [vmem:[%s0 + $0x48] sm:$0xff]
  %v30 = vld [vmem:[%s0 + $0x50] sm:$0xff]
  %v31 = vld [vmem:[%s0 + $0x58] sm:$0xff]
  %v32 = vld [vmem:[%s0 + $0x60] sm:$0xff]
  %v33 = vld [vmem:[%s0 + $0x68] sm:$0xff]
  %v34 = vld [vmem:[%s0 + $0x70] sm:$0xff]
  %v35 = vld [vmem:[%s0 + $0x78] sm:$0xff]
  %v36 = vld [vmem:[%s0 + $0x80] sm:$0xff]
  %v37 = vld [vmem:[%s0 + $0x88] sm:$0xff]
  %v38 = vld [vmem:[%s0 + $0x90] sm:$0xff]
  %v39 = vld [vmem:[%s0 + $0x98] sm:$0xff]
  %v40 = vld [vmem:[%s0 + $0xa0] sm:$0xff]
  %v41 = vld [vmem:[%s0 + $0xa8] sm:$0xff]
  %v42 = vld [vmem:[%s0 + $0xb0] sm:$0xff]
  %v43 = vld [vmem:[%s0 + $0xb8] sm:$0xff]
  %v44 = vld [vmem:[%s0 + $0xc0] sm:$0xff]
  %v45 = vld [vmem:[%s0 + $0xc8] sm:$0xff]
  %v46 = vld [vmem:[%s0 + $0xd0] sm:$0xff]
  %v47 = vld [vmem:[%s0 + $0xd8] sm:$0xff]
  %v48 = vld [vmem:[%s0 + $0xe0] sm:$0xff]
  %v49 = vld [vmem:[%s0 + $0xe8] sm:$0xff]
  %v50 = vld [vmem:[%s0 + $0xf0] sm:$0xff]
  %v51 = vld [vmem:[%s0 + $0xf8] sm:$0xff]
  %v52 = vld [vmem:[%s0 + $0x100] sm:$0xff]
  %v53 = vld [vmem:[%s0 + $0x108] sm:$0xff]
  %v54 = vld [vmem:[%s0 + $0x110] sm:$0xff]
  %v55 = vld [vmem:[%s0 + $0x118] sm:$0xff]
  %v56 = vld [vmem:[%s0 + $0x120] sm:$0xff]
  %v57 = vld [vmem:[%s0 + $0x128] sm:$0xff]
  %v58 = vld [vmem:[%s0 + $0x130] sm:$0xff]
  %v59 = vld [vmem:[%s0 + $0x138] sm:$0xff]
  %v60 = vld [vmem:[%s0 + $0x140] sm:$0xff]
  %v61 = vld [vmem:[%s0 + $0x148] sm:$0xff]
  %v62 = vld [vmem:[%s0 + $0x150] sm:$0xff]
  %v63 = vld [vmem:[%s0 + $0x158] sm:$0xff]
  %v64 = vld [vmem:[%s0 + $0x160] sm:$0xff]
  %v65 = vld [vmem:[%s0 + $0x168] sm:$0xff]
  %v66 = vld [vmem:[%s0 + $0x170] sm:$0xff]
  %v67 = vld [vmem:[%s0 + $0x178] sm:$0xff]
  %v68 = vld [vmem:[%s0 + $0x180] sm:$0xff]
  %v69 = vld [vmem:[%s0 + $0x188] sm:$0xff]
  %v70 = vld [vmem:[%s0 + $0x190] sm:$0xff]
  %v71 = vld [vmem:[%s0 + $0x198] sm:$0xff]
  %v72 = vld [vmem:[%s0 + $0x1a0] sm:$0xff]
  %v73 = vld [vmem:[%s0 + $0x1a8] sm:$0xff]
  %v74 = vld [vmem:[%s0 + $0x1b0] sm:$0xff]
  %v75 = vld [vmem:[%s0 + $0x1b8] sm:$0xff]
  %v76 = vld [vmem:[%s0 + $0x1c0] sm:$0xff]
  %v77 = vld [vmem:[%s0 + $0x1c8] sm:$0xff]
  %v78 = vld [vmem:[%s0 + $0x1d0] sm:$0xff]
  %v79 = vld [vmem:[%s0 + $0x1d8] sm:$0xff]
  %v80 = vld [vmem:[%s0 + $0x1e0] sm:$0xff]
  %v81 = vld [vmem:[%s0 + $0x1e8] sm:$0xff]
  %v82 = vld [vmem:[%s0 + $0x1f0] sm:$0xff]
  %v83 = vld [vmem:[%s0 + $0x1f8] sm:$0xff]
  %v84 = vld [vmem:[%s1] sm:$0xff]
  %v85 = vld [vmem:[%s1 + $0x8] sm:$0xff]
  %v86 = vld [vmem:[%s1 + $0x10] sm:$0xff]
  %v87 = vld [vmem:[%s1 + $0x18] sm:$0xff]
  %v88 = vld [vmem:[%s1 + $0x20] sm:$0xf]
  %v89 = vld [vmem:[%s2] sm:$0x1]
  %v91 = vlaneseq
  %v92 = vshrl.u32 %v91, 7
  %v93 = vsub.s32 0, %v92
  %v94 = vrot.slane %v89, %v93
  %vm96 = vcmask 293888
  %v98 = vsel %vm96, %v20, 0
  %v101 = vsel %vm96, %v21, 0
  %v104 = vsel %vm96, %v22, 0
  %v107 = vsel %vm96, %v23, 0
  %v110 = vsel %vm96, %v24, 0
  %v113 = vsel %vm96, %v25, 0
  %v116 = vsel %vm96, %v26, 0
  %v119 = vsel %vm96, %v27, 0
  %v122 = vsel %vm96, %v28, 0
  %v125 = vsel %vm96, %v29, 0
  %v128 = vsel %vm96, %v30, 0
  %v131 = vsel %vm96, %v31, 0
  %v134 = vsel %vm96, %v32, 0
  %v137 = vsel %vm96, %v33, 0
  %v140 = vsel %vm96, %v34, 0
  %v143 = vsel %vm96, %v35, 0
  %v146 = vsel %vm96, %v36, 0
  %v149 = vsel %vm96, %v37, 0
  %v152 = vsel %vm96, %v38, 0
  %v155 = vsel %vm96, %v39, 0
  %v158 = vsel %vm96, %v40, 0
  %v161 = vsel %vm96, %v41, 0
  %v164 = vsel %vm96, %v42, 0
  %v167 = vsel %vm96, %v43, 0
  %v170 = vsel %vm96, %v44, 0
  %v173 = vsel %vm96, %v45, 0
  %v176 = vsel %vm96, %v46, 0
  %v179 = vsel %vm96, %v47, 0
  %v182 = vsel %vm96, %v48, 0
  %v185 = vsel %vm96, %v49, 0
  %v188 = vsel %vm96, %v50, 0
  %v191 = vsel %vm96, %v51, 0
  %v194 = vsel %vm96, %v52, 0
  %v197 = vsel %vm96, %v53, 0
  %v200 = vsel %vm96, %v54, 0
  %v203 = vsel %vm96, %v55, 0
  %v206 = vsel %vm96, %v56, 0
  %v209 = vsel %vm96, %v57, 0
  %v212 = vsel %vm96, %v58, 0
  %v215 = vsel %vm96, %v59, 0
  %v218 = vsel %vm96, %v60, 0
  %v221 = vsel %vm96, %v61, 0
  %v224 = vsel %vm96, %v62, 0
  %v227 = vsel %vm96, %v63, 0
  %v230 = vsel %vm96, %v64, 0
  %v233 = vsel %vm96, %v65, 0
  %v236 = vsel %vm96, %v66, 0
  %v239 = vsel %vm96, %v67, 0
  %v242 = vsel %vm96, %v68, 0
  %v245 = vsel %vm96, %v69, 0
  %v248 = vsel %vm96, %v70, 0
  %v251 = vsel %vm96, %v71, 0
  %v254 = vsel %vm96, %v72, 0
  %v257 = vsel %vm96, %v73, 0
  %v260 = vsel %vm96, %v74, 0
  %v263 = vsel %vm96, %v75, 0
  %v266 = vsel %vm96, %v76, 0
  %v269 = vsel %vm96, %v77, 0
  %v272 = vsel %vm96, %v78, 0
  %v275 = vsel %vm96, %v79, 0
  %v278 = vsel %vm96, %v80, 0
  %v281 = vsel %vm96, %v81, 0
  %v284 = vsel %vm96, %v82, 0
  %v287 = vsel %vm96, %v83, 0
  %vm289 = vcmask 1043456
  %v291 = vsel %vm289, %v88, 0
  %293 = vmatprep.subr.mxu0 0.0
  %294 = vmatpush1.msra.mxu0 %v84
  %295 = vmatprep.subr.mxu0 0.0
  %296 = vmatpush1.msra.mxu0 %v85
  %297 = vmatprep.subr.mxu0 0.0
  %298 = vmatpush1.msra.mxu0 %v86
  %299 = vmatprep.subr.mxu0 0.0
  %300 = vmatpush1.msra.mxu0 %v87
  %301 = vmatprep.subr.mxu0 0.0
  %302 = vmatpush1.msra.mxu0 %v291
  %303 = vmatprep.subr.mxu0 0.0
  %304 = vmatpush1.msra.mxu0 0.0
  %305 = vmatprep.subr.mxu0 0.0
  %306 = vmatpush1.msra.mxu0 0.0
  %307 = vmatprep.subr.mxu0 0.0
  %308 = vmatpush1.msra.mxu0 0.0
  %309 = vmatprep.subr.mxu0 0.0
  %310 = vmatpush1.msra.mxu0 0.0
  %311 = vmatprep.subr.mxu0 0.0
  %312 = vmatpush1.msra.mxu0 0.0
  %313 = vmatprep.subr.mxu0 0.0
  %314 = vmatpush1.msra.mxu0 0.0
  %315 = vmatprep.subr.mxu0 0.0
  %316 = vmatpush1.msra.mxu0 0.0
  %317 = vmatprep.subr.mxu0 0.0
  %318 = vmatpush1.msra.mxu0 0.0
  %319 = vmatprep.subr.mxu0 0.0
  %320 = vmatpush1.msra.mxu0 0.0
  %321 = vmatprep.subr.mxu0 0.0
  %322 = vmatpush1.msra.mxu0 0.0
  %323 = vmatprep.subr.mxu0 0.0
  %324 = vmatpush1.msra.mxu0 0.0
  %325 = vmatprep.subr.mxu0 0.0
  %326 = vmatpush1.msra.mxu0 0.0
  %327 = vmatprep.subr.mxu0 0.0
  %328 = vmatpush1.msra.mxu0 0.0
  %329 = vmatprep.subr.mxu0 0.0
  %330 = vmatpush1.msra.mxu0 0.0
  %331 = vmatprep.subr.mxu0 0.0
  %332 = vmatpush1.msra.mxu0 0.0
  %333 = vmatprep.subr.mxu0 0.0
  %334 = vmatpush1.msra.mxu0 0.0
  %335 = vmatprep.subr.mxu0 0.0
  %336 = vmatpush1.msra.mxu0 0.0
  %337 = vmatprep.subr.mxu0 0.0
  %338 = vmatpush1.msra.mxu0 0.0
  %339 = vmatprep.subr.mxu0 0.0
  %340 = vmatpush1.msra.mxu0 0.0
  %341 = vmatprep.subr.mxu0 0.0
  %342 = vmatpush1.msra.mxu0 0.0
  %343 = vmatprep.subr.mxu0 0.0
  %344 = vmatpush1.msra.mxu0 0.0
  %345 = vmatprep.subr.mxu0 0.0
  %346 = vmatpush1.msra.mxu0 0.0
  %347 = vmatprep.subr.mxu0 0.0
  %348 = vmatpush1.msra.mxu0 0.0
  %349 = vmatprep.subr.mxu0 0.0
  %350 = vmatpush1.msra.mxu0 0.0
  %351 = vmatprep.subr.mxu0 0.0
  %352 = vmatpush1.msra.mxu0 0.0
  %353 = vmatprep.subr.mxu0 0.0
  %354 = vmatpush1.msra.mxu0 0.0
  %355 = vmatprep.subr.mxu0 0.0
  %356 = vmatpush1.msra.mxu0 0.0
  %357 = vmatprep.mubr.f32.mxu0 0.0
  %358 = vmatmul.mubr.f32.gmra.mrb[0].mxu0 %v98
  %v359 = vpop.f32.mrb[0].mxu0
  %v360 = vadd.f32 %v94, %v359
  %v361 = vpop.f32.mrb[0].mxu0
  %362 = vmatprep.mubr.f32.mxu0 0.0
  %363 = vmatmul.mubr.f32.gmra.mrb[0].mxu0 %v101
  %v364 = vpop.f32.mrb[0].mxu0
  %v365 = vadd.f32 %v94, %v364
  %v366 = vpop.f32.mrb[0].mxu0
  %367 = vmatprep.mubr.f32.mxu0 0.0
  %368 = vmatmul.mubr.f32.gmra.mrb[0].mxu0 %v104
  %v369 = vpop.f32.mrb[0].mxu0
  %v370 = vadd.f32 %v94, %v369
  %v371 = vpop.f32.mrb[0].mxu0
  %372 = vmatprep.mubr.f32.mxu0 0.0
  %373 = vmatmul.mubr.f32.gmra.mrb[0].mxu0 %v107
  %v374 = vpop.f32.mrb[0].mxu0
  %v375 = vadd.f32 %v94, %v374
  %v376 = vpop.f32.mrb[0].mxu0
  %377 = vmatprep.mubr.f32.mxu0 0.0
  %378 = vmatmul.mubr.f32.gmra.mrb[0].mxu0 %v110
  %v379 = vpop.f32.mrb[0].mxu0
  %v380 = vadd.f32 %v94, %v379
  %v381 = vpop.f32.mrb[0].mxu0
  %382 = vmatprep.mubr.f32.mxu0 0.0
  %383 = vmatmul.mubr.f32.gmra.mrb[0].mxu0 %v113
  %v384 = vpop.f32.mrb[0].mxu0
  %v385 = vadd.f32 %v94, %v384
  %v386 = vpop.f32.mrb[0].mxu0
  %387 = vmatprep.mubr.f32.mxu0 0.0
  %388 = vmatmul.mubr.f32.gmra.mrb[0].mxu0 %v116
  %v389 = vpop.f32.mrb[0].mxu0
  %v390 = vadd.f32 %v94, %v389
  %v391 = vpop.f32.mrb[0].mxu0
  %392 = vmatprep.mubr.f32.mxu0 0.0
  %393 = vmatmul.mubr.f32.gmra.mrb[0].mxu0 %v119
  %v394 = vpop.f32.mrb[0].mxu0
  %v395 = vadd.f32 %v94, %v394
  %v396 = vpop.f32.mrb[0].mxu0
  %397 = vmatprep.mubr.f32.mxu0 0.0
  %398 = vmatmul.mubr.f32.gmra.mrb[0].mxu0 %v122
  %v399 = vpop.f32.mrb[0].mxu0
  %v400 = vadd.f32 %v94, %v399
  %v401 = vpop.f32.mrb[0].mxu0
  %402 = vmatprep.mubr.f32.mxu0 0.0
  %403 = vmatmul.mubr.f32.gmra.mrb[0].mxu0 %v125
  %v404 = vpop.f32.mrb[0].mxu0
  %v405 = vadd.f32 %v94, %v404
  %v406 = vpop.f32.mrb[0].mxu0
  %407 = vmatprep.mubr.f32.mxu0 0.0
  %408 = vmatmul.mubr.f32.gmra.mrb[0].mxu0 %v128
  %v409 = vpop.f32.mrb[0].mxu0
  %v410 = vadd.f32 %v94, %v409
  %v411 = vpop.f32.mrb[0].mxu0
  %412 = vmatprep.mubr.f32.mxu0 0.0
  %413 = vmatmul.mubr.f32.gmra.mrb[0].mxu0 %v131
  %v414 = vpop.f32.mrb[0].mxu0
  %v415 = vadd.f32 %v94, %v414
  %v416 = vpop.f32.mrb[0].mxu0
  %417 = vmatprep.mubr.f32.mxu0 0.0
  %418 = vmatmul.mubr.f32.gmra.mrb[0].mxu0 %v134
  %v419 = vpop.f32.mrb[0].mxu0
  %v420 = vadd.f32 %v94, %v419
  %v421 = vpop.f32.mrb[0].mxu0
  %422 = vmatprep.mubr.f32.mxu0 0.0
  %423 = vmatmul.mubr.f32.gmra.mrb[0].mxu0 %v137
  %v424 = vpop.f32.mrb[0].mxu0
  %v425 = vadd.f32 %v94, %v424
  %v426 = vpop.f32.mrb[0].mxu0
  %427 = vmatprep.mubr.f32.mxu0 0.0
  %428 = vmatmul.mubr.f32.gmra.mrb[0].mxu0 %v140
  %v429 = vpop.f32.mrb[0].mxu0
  %v430 = vadd.f32 %v94, %v429
  %v431 = vpop.f32.mrb[0].mxu0
  %432 = vmatprep.mubr.f32.mxu0 0.0
  %433 = vmatmul.mubr.f32.gmra.mrb[0].mxu0 %v143
  %v434 = vpop.f32.mrb[0].mxu0
  %v435 = vadd.f32 %v94, %v434
  %v436 = vpop.f32.mrb[0].mxu0
  %437 = vmatprep.mubr.f32.mxu0 0.0
  %438 = vmatmul.mubr.f32.gmra.mrb[0].mxu0 %v146
  %v439 = vpop.f32.mrb[0].mxu0
  %v440 = vadd.f32 %v94, %v439
  %v441 = vpop.f32.mrb[0].mxu0
  %442 = vmatprep.mubr.f32.mxu0 0.0
  %443 = vmatmul.mubr.f32.gmra.mrb[0].mxu0 %v149
  %v444 = vpop.f32.mrb[0].mxu0
  %v445 = vadd.f32 %v94, %v444
  %v446 = vpop.f32.mrb[0].mxu0
  %447 = vmatprep.mubr.f32.mxu0 0.0
  %448 = vmatmul.mubr.f32.gmra.mrb[0].mxu0 %v152
  %v449 = vpop.f32.mrb[0].mxu0
  %v450 = vadd.f32 %v94, %v449
  %v451 = vpop.f32.mrb[0].mxu0
  %452 = vmatprep.mubr.f32.mxu0 0.0
  %453 = vmatmul.mubr.f32.gmra.mrb[0].mxu0 %v155
  %v454 = vpop.f32.mrb[0].mxu0
  %v455 = vadd.f32 %v94, %v454
  %v456 = vpop.f32.mrb[0].mxu0
  %457 = vmatprep.mubr.f32.mxu0 0.0
  %458 = vmatmul.mubr.f32.gmra.mrb[0].mxu0 %v158
  %v459 = vpop.f32.mrb[0].mxu0
  %v460 = vadd.f32 %v94, %v459
  %v461 = vpop.f32.mrb[0].mxu0
  %462 = vmatprep.mubr.f32.mxu0 0.0
  %463 = vmatmul.mubr.f32.gmra.mrb[0].mxu0 %v161
  %v464 = vpop.f32.mrb[0].mxu0
  %v465 = vadd.f32 %v94, %v464
  %v466 = vpop.f32.mrb[0].mxu0
  %467 = vmatprep.mubr.f32.mxu0 0.0
  %468 = vmatmul.mubr.f32.gmra.mrb[0].mxu0 %v164
  %v469 = vpop.f32.mrb[0].mxu0
  %v470 = vadd.f32 %v94, %v469
  %v471 = vpop.f32.mrb[0].mxu0
  %472 = vmatprep.mubr.f32.mxu0 0.0
  %473 = vmatmul.mubr.f32.gmra.mrb[0].mxu0 %v167
  %v474 = vpop.f32.mrb[0].mxu0
  %v475 = vadd.f32 %v94, %v474
  %v476 = vpop.f32.mrb[0].mxu0
  %477 = vmatprep.mubr.f32.mxu0 0.0
  %478 = vmatmul.mubr.f32.gmra.mrb[0].mxu0 %v170
  %v479 = vpop.f32.mrb[0].mxu0
  %v480 = vadd.f32 %v94, %v479
  %v481 = vpop.f32.mrb[0].mxu0
  %482 = vmatprep.mubr.f32.mxu0 0.0
  %483 = vmatmul.mubr.f32.gmra.mrb[0].mxu0 %v173
  %v484 = vpop.f32.mrb[0].mxu0
  %v485 = vadd.f32 %v94, %v484
  %v486 = vpop.f32.mrb[0].mxu0
  %487 = vmatprep.mubr.f32.mxu0 0.0
  %488 = vmatmul.mubr.f32.gmra.mrb[0].mxu0 %v176
  %v489 = vpop.f32.mrb[0].mxu0
  %v490 = vadd.f32 %v94, %v489
  %v491 = vpop.f32.mrb[0].mxu0
  %492 = vmatprep.mubr.f32.mxu0 0.0
  %493 = vmatmul.mubr.f32.gmra.mrb[0].mxu0 %v179
  %v494 = vpop.f32.mrb[0].mxu0
  %v495 = vadd.f32 %v94, %v494
  %v496 = vpop.f32.mrb[0].mxu0
  %497 = vmatprep.mubr.f32.mxu0 0.0
  %498 = vmatmul.mubr.f32.gmra.mrb[0].mxu0 %v182
  %v499 = vpop.f32.mrb[0].mxu0
  %v500 = vadd.f32 %v94, %v499
  %v501 = vpop.f32.mrb[0].mxu0
  %502 = vmatprep.mubr.f32.mxu0 0.0
  %503 = vmatmul.mubr.f32.gmra.mrb[0].mxu0 %v185
  %v504 = vpop.f32.mrb[0].mxu0
  %v505 = vadd.f32 %v94, %v504
  %v506 = vpop.f32.mrb[0].mxu0
  %507 = vmatprep.mubr.f32.mxu0 0.0
  %508 = vmatmul.mubr.f32.gmra.mrb[0].mxu0 %v188
  %v509 = vpop.f32.mrb[0].mxu0
  %v510 = vadd.f32 %v94, %v509
  %v511 = vpop.f32.mrb[0].mxu0
  %512 = vmatprep.mubr.f32.mxu0 0.0
  %513 = vmatmul.mubr.f32.gmra.mrb[0].mxu0 %v191
  %v514 = vpop.f32.mrb[0].mxu0
  %v515 = vadd.f32 %v94, %v514
  %v516 = vpop.f32.mrb[0].mxu0
  %517 = vmatprep.mubr.f32.mxu0 0.0
  %518 = vmatmul.mubr.f32.gmra.mrb[0].mxu0 %v194
  %v519 = vpop.f32.mrb[0].mxu0
  %v520 = vadd.f32 %v94, %v519
  %v521 = vpop.f32.mrb[0].mxu0
  %522 = vmatprep.mubr.f32.mxu0 0.0
  %523 = vmatmul.mubr.f32.gmra.mrb[0].mxu0 %v197
  %v524 = vpop.f32.mrb[0].mxu0
  %v525 = vadd.f32 %v94, %v524
  %v526 = vpop.f32.mrb[0].mxu0
  %527 = vmatprep.mubr.f32.mxu0 0.0
  %528 = vmatmul.mubr.f32.gmra.mrb[0].mxu0 %v200
  %v529 = vpop.f32.mrb[0].mxu0
  %v530 = vadd.f32 %v94, %v529
  %v531 = vpop.f32.mrb[0].mxu0
  %532 = vmatprep.mubr.f32.mxu0 0.0
  %533 = vmatmul.mubr.f32.gmra.mrb[0].mxu0 %v203
  %v534 = vpop.f32.mrb[0].mxu0
  %v535 = vadd.f32 %v94, %v534
  %v536 = vpop.f32.mrb[0].mxu0
  %537 = vmatprep.mubr.f32.mxu0 0.0
  %538 = vmatmul.mubr.f32.gmra.mrb[0].mxu0 %v206
  %v539 = vpop.f32.mrb[0].mxu0
  %v540 = vadd.f32 %v94, %v539
  %v541 = vpop.f32.mrb[0].mxu0
  %542 = vmatprep.mubr.f32.mxu0 0.0
  %543 = vmatmul.mubr.f32.gmra.mrb[0].mxu0 %v209
  %v544 = vpop.f32.mrb[0].mxu0
  %v545 = vadd.f32 %v94, %v544
  %v546 = vpop.f32.mrb[0].mxu0
  %547 = vmatprep.mubr.f32.mxu0 0.0
  %548 = vmatmul.mubr.f32.gmra.mrb[0].mxu0 %v212
  %v549 = vpop.f32.mrb[0].mxu0
  %v550 = vadd.f32 %v94, %v549
  %v551 = vpop.f32.mrb[0].mxu0
  %552 = vmatprep.mubr.f32.mxu0 0.0
  %553 = vmatmul.mubr.f32.gmra.mrb[0].mxu0 %v215
  %v554 = vpop.f32.mrb[0].mxu0
  %v555 = vadd.f32 %v94, %v554
  %v556 = vpop.f32.mrb[0].mxu0
  %557 = vmatprep.mubr.f32.mxu0 0.0
  %558 = vmatmul.mubr.f32.gmra.mrb[0].mxu0 %v218
  %v559 = vpop.f32.mrb[0].mxu0
  %v560 = vadd.f32 %v94, %v559
  %v561 = vpop.f32.mrb[0].mxu0
  %562 = vmatprep.mubr.f32.mxu0 0.0
  %563 = vmatmul.mubr.f32.gmra.mrb[0].mxu0 %v221
  %v564 = vpop.f32.mrb[0].mxu0
  %v565 = vadd.f32 %v94, %v564
  %v566 = vpop.f32.mrb[0].mxu0
  %567 = vmatprep.mubr.f32.mxu0 0.0
  %568 = vmatmul.mubr.f32.gmra.mrb[0].mxu0 %v224
  %v569 = vpop.f32.mrb[0].mxu0
  %v570 = vadd.f32 %v94, %v569
  %v571 = vpop.f32.mrb[0].mxu0
  %572 = vmatprep.mubr.f32.mxu0 0.0
  %573 = vmatmul.mubr.f32.gmra.mrb[0].mxu0 %v227
  %v574 = vpop.f32.mrb[0].mxu0
  %v575 = vadd.f32 %v94, %v574
  %v576 = vpop.f32.mrb[0].mxu0
  %577 = vmatprep.mubr.f32.mxu0 0.0
  %578 = vmatmul.mubr.f32.gmra.mrb[0].mxu0 %v230
  %v579 = vpop.f32.mrb[0].mxu0
  %v580 = vadd.f32 %v94, %v579
  %v581 = vpop.f32.mrb[0].mxu0
  %582 = vmatprep.mubr.f32.mxu0 0.0
  %583 = vmatmul.mubr.f32.gmra.mrb[0].mxu0 %v233
  %v584 = vpop.f32.mrb[0].mxu0
  %v585 = vadd.f32 %v94, %v584
  %v586 = vpop.f32.mrb[0].mxu0
  %587 = vmatprep.mubr.f32.mxu0 0.0
  %588 = vmatmul.mubr.f32.gmra.mrb[0].mxu0 %v236
  %v589 = vpop.f32.mrb[0].mxu0
  %v590 = vadd.f32 %v94, %v589
  %v591 = vpop.f32.mrb[0].mxu0
  %592 = vmatprep.mubr.f32.mxu0 0.0
  %593 = vmatmul.mubr.f32.gmra.mrb[0].mxu0 %v239
  %v594 = vpop.f32.mrb[0].mxu0
  %v595 = vadd.f32 %v94, %v594
  %v596 = vpop.f32.mrb[0].mxu0
  %597 = vmatprep.mubr.f32.mxu0 0.0
  %598 = vmatmul.mubr.f32.gmra.mrb[0].mxu0 %v242
  %v599 = vpop.f32.mrb[0].mxu0
  %v600 = vadd.f32 %v94, %v599
  %v601 = vpop.f32.mrb[0].mxu0
  %602 = vmatprep.mubr.f32.mxu0 0.0
  %603 = vmatmul.mubr.f32.gmra.mrb[0].mxu0 %v245
  %v604 = vpop.f32.mrb[0].mxu0
  %v605 = vadd.f32 %v94, %v604
  %v606 = vpop.f32.mrb[0].mxu0
  %607 = vmatprep.mubr.f32.mxu0 0.0
  %608 = vmatmul.mubr.f32.gmra.mrb[0].mxu0 %v248
  %v609 = vpop.f32.mrb[0].mxu0
  %v610 = vadd.f32 %v94, %v609
  %v611 = vpop.f32.mrb[0].mxu0
  %612 = vmatprep.mubr.f32.mxu0 0.0
  %613 = vmatmul.mubr.f32.gmra.mrb[0].mxu0 %v251
  %v614 = vpop.f32.mrb[0].mxu0
  %v615 = vadd.f32 %v94, %v614
  %v616 = vpop.f32.mrb[0].mxu0
  %617 = vmatprep.mubr.f32.mxu0 0.0
  %618 = vmatmul.mubr.f32.gmra.mrb[0].mxu0 %v254
  %v619 = vpop.f32.mrb[0].mxu0
  %v620 = vadd.f32 %v94, %v619
  %v621 = vpop.f32.mrb[0].mxu0
  %622 = vmatprep.mubr.f32.mxu0 0.0
  %623 = vmatmul.mubr.f32.gmra.mrb[0].mxu0 %v257
  %v624 = vpop.f32.mrb[0].mxu0
  %v625 = vadd.f32 %v94, %v624
  %v626 = vpop.f32.mrb[0].mxu0
  %627 = vmatprep.mubr.f32.mxu0 0.0
  %628 = vmatmul.mubr.f32.gmra.mrb[0].mxu0 %v260
  %v629 = vpop.f32.mrb[0].mxu0
  %v630 = vadd.f32 %v94, %v629
  %v631 = vpop.f32.mrb[0].mxu0
  %632 = vmatprep.mubr.f32.mxu0 0.0
  %633 = vmatmul.mubr.f32.gmra.mrb[0].mxu0 %v263
  %v634 = vpop.f32.mrb[0].mxu0
  %v635 = vadd.f32 %v94, %v634
  %v636 = vpop.f32.mrb[0].mxu0
  %637 = vmatprep.mubr.f32.mxu0 0.0
  %638 = vmatmul.mubr.f32.gmra.mrb[0].mxu0 %v266
  %v639 = vpop.f32.mrb[0].mxu0
  %v640 = vadd.f32 %v94, %v639
  %v641 = vpop.f32.mrb[0].mxu0
  %642 = vmatprep.mubr.f32.mxu0 0.0
  %643 = vmatmul.mubr.f32.gmra.mrb[0].mxu0 %v269
  %v644 = vpop.f32.mrb[0].mxu0
  %v645 = vadd.f32 %v94, %v644
  %v646 = vpop.f32.mrb[0].mxu0
  %647 = vmatprep.mubr.f32.mxu0 0.0
  %648 = vmatmul.mubr.f32.gmra.mrb[0].mxu0 %v272
  %v649 = vpop.f32.mrb[0].mxu0
  %v650 = vadd.f32 %v94, %v649
  %v651 = vpop.f32.mrb[0].mxu0
  %652 = vmatprep.mubr.f32.mxu0 0.0
  %653 = vmatmul.mubr.f32.gmra.mrb[0].mxu0 %v275
  %v654 = vpop.f32.mrb[0].mxu0
  %v655 = vadd.f32 %v94, %v654
  %v656 = vpop.f32.mrb[0].mxu0
  %657 = vmatprep.mubr.f32.mxu0 0.0
  %658 = vmatmul.mubr.f32.gmra.mrb[0].mxu0 %v278
  %v659 = vpop.f32.mrb[0].mxu0
  %v660 = vadd.f32 %v94, %v659
  %v661 = vpop.f32.mrb[0].mxu0
  %662 = vmatprep.mubr.f32.mxu0 0.0
  %663 = vmatmul.mubr.f32.gmra.mrb[0].mxu0 %v281
  %v664 = vpop.f32.mrb[0].mxu0
  %v665 = vadd.f32 %v94, %v664
  %v666 = vpop.f32.mrb[0].mxu0
  %667 = vmatprep.mubr.f32.mxu0 0.0
  %668 = vmatmul.mubr.f32.gmra.mrb[0].mxu0 %v284
  %v669 = vpop.f32.mrb[0].mxu0
  %v670 = vadd.f32 %v94, %v669
  %v671 = vpop.f32.mrb[0].mxu0
  %672 = vmatprep.mubr.f32.mxu0 0.0
  %673 = vmatmul.mubr.f32.gmra.mrb[0].mxu0 %v287
  %v674 = vpop.f32.mrb[0].mxu0
  %v675 = vadd.f32 %v94, %v674
  %v676 = vpop.f32.mrb[0].mxu0
  %677 = vdwg.mxu0
  %v678 = vadd.f32 %v360, %v365
  %v679 = vadd.f32 %v678, %v370
  %v680 = vadd.f32 %v679, %v375
  %v681 = vadd.f32 %v680, %v380
  %v682 = vadd.f32 %v681, %v385
  %v683 = vadd.f32 %v682, %v390
  %v684 = vadd.f32 %v683, %v395
  %v685 = vadd.f32 %v684, %v400
  %v686 = vadd.f32 %v685, %v405
  %v687 = vadd.f32 %v686, %v410
  %v688 = vadd.f32 %v687, %v415
  %v689 = vadd.f32 %v688, %v420
  %v690 = vadd.f32 %v689, %v425
  %v691 = vadd.f32 %v690, %v430
  %v692 = vadd.f32 %v691, %v435
  %v693 = vadd.f32 %v692, %v440
  %v694 = vadd.f32 %v693, %v445
  %v695 = vadd.f32 %v694, %v450
  %v696 = vadd.f32 %v695, %v455
  %v697 = vadd.f32 %v696, %v460
  %v698 = vadd.f32 %v697, %v465
  %v699 = vadd.f32 %v698, %v470
  %v700 = vadd.f32 %v699, %v475
  %v701 = vadd.f32 %v700, %v480
  %v702 = vadd.f32 %v701, %v485
  %v703 = vadd.f32 %v702, %v490
  %v704 = vadd.f32 %v703, %v495
  %v705 = vadd.f32 %v704, %v500
  %v706 = vadd.f32 %v705, %v505
  %v707 = vadd.f32 %v706, %v510
  %v708 = vadd.f32 %v707, %v515
  %v709 = vadd.f32 %v708, %v520
  %v710 = vadd.f32 %v709, %v525
  %v711 = vadd.f32 %v710, %v530
  %v712 = vadd.f32 %v711, %v535
  %v713 = vadd.f32 %v712, %v540
  %v714 = vadd.f32 %v713, %v545
  %v715 = vadd.f32 %v714, %v550
  %v716 = vadd.f32 %v715, %v555
  %v717 = vadd.f32 %v716, %v560
  %v718 = vadd.f32 %v717, %v565
  %v719 = vadd.f32 %v718, %v570
  %v720 = vadd.f32 %v719, %v575
  %v721 = vadd.f32 %v720, %v580
  %v722 = vadd.f32 %v721, %v585
  %v723 = vadd.f32 %v722, %v590
  %v724 = vadd.f32 %v723, %v595
  %v725 = vadd.f32 %v724, %v600
  %v726 = vadd.f32 %v725, %v605
  %v727 = vadd.f32 %v726, %v610
  %v728 = vadd.f32 %v727, %v615
  %v729 = vadd.f32 %v728, %v620
  %v730 = vadd.f32 %v729, %v625
  %v731 = vadd.f32 %v730, %v630
  %v732 = vadd.f32 %v731, %v635
  %v733 = vadd.f32 %v732, %v640
  %v734 = vadd.f32 %v733, %v645
  %v735 = vadd.f32 %v734, %v650
  %v736 = vadd.f32 %v735, %v655
  %v737 = vadd.f32 %v736, %v660
  %v738 = vadd.f32 %v737, %v665
  %v739 = vadd.f32 %v738, %v670
  %v740 = vadd.f32 %v739, %v675
  %v741 = vrot.slane %v740, 4
  %v742 = vadd.f32 %v740, %v741
  %v743 = vrot.slane %v742, 2
  %v744 = vadd.f32 %v742, %v743
  %v745 = vrot.slane %v744, 1
  %v746 = vadd.f32 %v744, %v745
  %v747 = vmul.f32 %v746, 0.001953125
  %v748 = vsub.f32 %v360, %v747
  %v749 = vsub.f32 %v365, %v747
  %v750 = vsub.f32 %v370, %v747
  %v751 = vsub.f32 %v375, %v747
  %v752 = vsub.f32 %v380, %v747
  %v753 = vsub.f32 %v385, %v747
  %v754 = vsub.f32 %v390, %v747
  %v755 = vsub.f32 %v395, %v747
  %v756 = vsub.f32 %v400, %v747
  %v757 = vsub.f32 %v405, %v747
  %v758 = vsub.f32 %v410, %v747
  %v759 = vsub.f32 %v415, %v747
  %v760 = vsub.f32 %v420, %v747
  %v761 = vsub.f32 %v425, %v747
  %v762 = vsub.f32 %v430, %v747
  %v763 = vsub.f32 %v435, %v747
  %v764 = vsub.f32 %v440, %v747
  %v765 = vsub.f32 %v445, %v747
  %v766 = vsub.f32 %v450, %v747
  %v767 = vsub.f32 %v455, %v747
  %v768 = vsub.f32 %v460, %v747
  %v769 = vsub.f32 %v465, %v747
  %v770 = vsub.f32 %v470, %v747
  %v771 = vsub.f32 %v475, %v747
  %v772 = vsub.f32 %v480, %v747
  %v773 = vsub.f32 %v485, %v747
  %v774 = vsub.f32 %v490, %v747
  %v775 = vsub.f32 %v495, %v747
  %v776 = vsub.f32 %v500, %v747
  %v777 = vsub.f32 %v505, %v747
  %v778 = vsub.f32 %v510, %v747
  %v779 = vsub.f32 %v515, %v747
  %v780 = vsub.f32 %v520, %v747
  %v781 = vsub.f32 %v525, %v747
  %v782 = vsub.f32 %v530, %v747
  %v783 = vsub.f32 %v535, %v747
  %v784 = vsub.f32 %v540, %v747
  %v785 = vsub.f32 %v545, %v747
  %v786 = vsub.f32 %v550, %v747
  %v787 = vsub.f32 %v555, %v747
  %v788 = vsub.f32 %v560, %v747
  %v789 = vsub.f32 %v565, %v747
  %v790 = vsub.f32 %v570, %v747
  %v791 = vsub.f32 %v575, %v747
  %v792 = vsub.f32 %v580, %v747
  %v793 = vsub.f32 %v585, %v747
  %v794 = vsub.f32 %v590, %v747
  %v795 = vsub.f32 %v595, %v747
  %v796 = vsub.f32 %v600, %v747
  %v797 = vsub.f32 %v605, %v747
  %v798 = vsub.f32 %v610, %v747
  %v799 = vsub.f32 %v615, %v747
  %v800 = vsub.f32 %v620, %v747
  %v801 = vsub.f32 %v625, %v747
  %v802 = vsub.f32 %v630, %v747
  %v803 = vsub.f32 %v635, %v747
  %v804 = vsub.f32 %v640, %v747
  %v805 = vsub.f32 %v645, %v747
  %v806 = vsub.f32 %v650, %v747
  %v807 = vsub.f32 %v655, %v747
  %v808 = vsub.f32 %v660, %v747
  %v809 = vsub.f32 %v665, %v747
  %v810 = vsub.f32 %v670, %v747
  %v811 = vsub.f32 %v675, %v747
  %v812 = vmul.f32 %v748, %v748
  %v813 = vmul.f32 %v749, %v749
  %v814 = vmul.f32 %v750, %v750
  %v815 = vmul.f32 %v751, %v751
  %v816 = vmul.f32 %v752, %v752
  %v817 = vmul.f32 %v753, %v753
  %v818 = vmul.f32 %v754, %v754
  %v819 = vmul.f32 %v755, %v755
  %v820 = vmul.f32 %v756, %v756
  %v821 = vmul.f32 %v757, %v757
  %v822 = vmul.f32 %v758, %v758
  %v823 = vmul.f32 %v759, %v759
  %v824 = vmul.f32 %v760, %v760
  %v825 = vmul.f32 %v761, %v761
  %v826 = vmul.f32 %v762, %v762
  %v827 = vmul.f32 %v763, %v763
  %v828 = vmul.f32 %v764, %v764
  %v829 = vmul.f32 %v765, %v765
  %v830 = vmul.f32 %v766, %v766
  %v831 = vmul.f32 %v767, %v767
  %v832 = vmul.f32 %v768, %v768
  %v833 = vmul.f32 %v769, %v769
  %v834 = vmul.f32 %v770, %v770
  %v835 = vmul.f32 %v771, %v771
  %v836 = vmul.f32 %v772, %v772
  %v837 = vmul.f32 %v773, %v773
  %v838 = vmul.f32 %v774, %v774
  %v839 = vmul.f32 %v775, %v775
  %v840 = vmul.f32 %v776, %v776
  %v841 = vmul.f32 %v777, %v777
  %v842 = vmul.f32 %v778, %v778
  %v843 = vmul.f32 %v779, %v779
  %v844 = vmul.f32 %v780, %v780
  %v845 = vmul.f32 %v781, %v781
  %v846 = vmul.f32 %v782, %v782
  %v847 = vmul.f32 %v783, %v783
  %v848 = vmul.f32 %v784, %v784
  %v849 = vmul.f32 %v785, %v785
  %v850 = vmul.f32 %v786, %v786
  %v851 = vmul.f32 %v787, %v787
  %v852 = vmul.f32 %v788, %v788
  %v853 = vmul.f32 %v789, %v789
  %v854 = vmul.f32 %v790, %v790
  %v855 = vmul.f32 %v791, %v791
  %v856 = vmul.f32 %v792, %v792
  %v857 = vmul.f32 %v793, %v793
  %v858 = vmul.f32 %v794, %v794
  %v859 = vmul.f32 %v795, %v795
  %v860 = vmul.f32 %v796, %v796
  %v861 = vmul.f32 %v797, %v797
  %v862 = vmul.f32 %v798, %v798
  %v863 = vmul.f32 %v799, %v799
  %v864 = vmul.f32 %v800, %v800
  %v865 = vmul.f32 %v801, %v801
  %v866 = vmul.f32 %v802, %v802
  %v867 = vmul.f32 %v803, %v803
  %v868 = vmul.f32 %v804, %v804
  %v869 = vmul.f32 %v805, %v805
  %v870 = vmul.f32 %v806, %v806
  %v871 = vmul.f32 %v807, %v807
  %v872 = vmul.f32 %v808, %v808
  %v873 = vmul.f32 %v809, %v809
  %v874 = vmul.f32 %v810, %v810
  %v875 = vmul.f32 %v811, %v811
  %v876 = vadd.f32 %v812, %v813
  %v877 = vadd.f32 %v876, %v814
  %v878 = vadd.f32 %v877, %v815
  %v879 = vadd.f32 %v878, %v816
  %v880 = vadd.f32 %v879, %v817
  %v881 = vadd.f32 %v880, %v818
  %v882 = vadd.f32 %v881, %v819
  %v883 = vadd.f32 %v882, %v820
  %v884 = vadd.f32 %v883, %v821
  %v885 = vadd.f32 %v884, %v822
  %v886 = vadd.f32 %v885, %v823
  %v887 = vadd.f32 %v886, %v824
  %v888 = vadd.f32 %v887, %v825
  %v889 = vadd.f32 %v888, %v826
  %v890 = vadd.f32 %v889, %v827
  %v891 = vadd.f32 %v890, %v828
  %v892 = vadd.f32 %v891, %v829
  %v893 = vadd.f32 %v892, %v830
  %v894 = vadd.f32 %v893, %v831
  %v895 = vadd.f32 %v894, %v832
  %v896 = vadd.f32 %v895, %v833
  %v897 = vadd.f32 %v896, %v834
  %v898 = vadd.f32 %v897, %v835
  %v899 = vadd.f32 %v898, %v836
  %v900 = vadd.f32 %v899, %v837
  %v901 = vadd.f32 %v900, %v838
  %v902 = vadd.f32 %v901, %v839
  %v903 = vadd.f32 %v902, %v840
  %v904 = vadd.f32 %v903, %v841
  %v905 = vadd.f32 %v904, %v842
  %v906 = vadd.f32 %v905, %v843
  %v907 = vadd.f32 %v906, %v844
  %v908 = vadd.f32 %v907, %v845
  %v909 = vadd.f32 %v908, %v846
  %v910 = vadd.f32 %v909, %v847
  %v911 = vadd.f32 %v910, %v848
  %v912 = vadd.f32 %v911, %v849
  %v913 = vadd.f32 %v912, %v850
  %v914 = vadd.f32 %v913, %v851
  %v915 = vadd.f32 %v914, %v852
  %v916 = vadd.f32 %v915, %v853
  %v917 = vadd.f32 %v916, %v854
  %v918 = vadd.f32 %v917, %v855
  %v919 = vadd.f32 %v918, %v856
  %v920 = vadd.f32 %v919, %v857
  %v921 = vadd.f32 %v920, %v858
  %v922 = vadd.f32 %v921, %v859
  %v923 = vadd.f32 %v922, %v860
  %v924 = vadd.f32 %v923, %v861
  %v925 = vadd.f32 %v924, %v862
  %v926 = vadd.f32 %v925, %v863
  %v927 = vadd.f32 %v926, %v864
  %v928 = vadd.f32 %v927, %v865
  %v929 = vadd.f32 %v928, %v866
  %v930 = vadd.f32 %v929, %v867
  %v931 = vadd.f32 %v930, %v868
  %v932 = vadd.f32 %v931, %v869
  %v933 = vadd.f32 %v932, %v870
  %v934 = vadd.f32 %v933, %v871
  %v935 = vadd.f32 %v934, %v872
  %v936 = vadd.f32 %v935, %v873
  %v937 = vadd.f32 %v936, %v874
  %v938 = vadd.f32 %v937, %v875
  %v939 = vrot.slane %v938, 4
  %v940 = vadd.f32 %v938, %v939
  %v941 = vrot.slane %v940, 2
  %v942 = vadd.f32 %v940, %v941
  %v943 = vrot.slane %v942, 1
  %v944 = vadd.f32 %v942, %v943
  %v945 = vmul.f32 %v944, 0.001953125
  %v946 = vld [vmem:[%s3] sm:$0x1]
  %v947 = vadd.f32 %v945, 1e-05
  %v948 = vrsqrt.pop %v947
  %v949 = vmul.f32 %v946, %v948
  %v951 = vlaneseq
  %v952 = vshrl.u32 %v951, 7
  %v953 = vsub.s32 0, %v952
  %v954 = vrot.slane %v949, %v953
  %v956 = vmul.f32 %v748, %v954
  %v957 = vmul.f32 %v749, %v954
  %v958 = vmul.f32 %v750, %v954
  %v959 = vmul.f32 %v751, %v954
  %v960 = vmul.f32 %v752, %v954
  %v961 = vmul.f32 %v753, %v954
  %v962 = vmul.f32 %v754, %v954
  %v963 = vmul.f32 %v755, %v954
  %v964 = vmul.f32 %v756, %v954
  %v965 = vmul.f32 %v757, %v954
  %v966 = vmul.f32 %v758, %v954
  %v967 = vmul.f32 %v759, %v954
  %v968 = vmul.f32 %v760, %v954
  %v969 = vmul.f32 %v761, %v954
  %v970 = vmul.f32 %v762, %v954
  %v971 = vmul.f32 %v763, %v954
  %v972 = vmul.f32 %v764, %v954
  %v973 = vmul.f32 %v765, %v954
  %v974 = vmul.f32 %v766, %v954
  %v975 = vmul.f32 %v767, %v954
  %v976 = vmul.f32 %v768, %v954
  %v977 = vmul.f32 %v769, %v954
  %v978 = vmul.f32 %v770, %v954
  %v979 = vmul.f32 %v771, %v954
  %v980 = vmul.f32 %v772, %v954
  %v981 = vmul.f32 %v773, %v954
  %v982 = vmul.f32 %v774, %v954
  %v983 = vmul.f32 %v775, %v954
  %v984 = vmul.f32 %v776, %v954
  %v985 = vmul.f32 %v777, %v954
  %v986 = vmul.f32 %v778, %v954
  %v987 = vmul.f32 %v779, %v954
  %v988 = vmul.f32 %v780, %v954
  %v989 = vmul.f32 %v781, %v954
  %v990 = vmul.f32 %v782, %v954
  %v991 = vmul.f32 %v783, %v954
  %v992 = vmul.f32 %v784, %v954
  %v993 = vmul.f32 %v785, %v954
  %v994 = vmul.f32 %v786, %v954
  %v995 = vmul.f32 %v787, %v954
  %v996 = vmul.f32 %v788, %v954
  %v997 = vmul.f32 %v789, %v954
  %v998 = vmul.f32 %v790, %v954
  %v999 = vmul.f32 %v791, %v954
  %v1000 = vmul.f32 %v792, %v954
  %v1001 = vmul.f32 %v793, %v954
  %v1002 = vmul.f32 %v794, %v954
  %v1003 = vmul.f32 %v795, %v954
  %v1004 = vmul.f32 %v796, %v954
  %v1005 = vmul.f32 %v797, %v954
  %v1006 = vmul.f32 %v798, %v954
  %v1007 = vmul.f32 %v799, %v954
  %v1008 = vmul.f32 %v800, %v954
  %v1009 = vmul.f32 %v801, %v954
  %v1010 = vmul.f32 %v802, %v954
  %v1011 = vmul.f32 %v803, %v954
  %v1012 = vmul.f32 %v804, %v954
  %v1013 = vmul.f32 %v805, %v954
  %v1014 = vmul.f32 %v806, %v954
  %v1015 = vmul.f32 %v807, %v954
  %v1016 = vmul.f32 %v808, %v954
  %v1017 = vmul.f32 %v809, %v954
  %v1018 = vmul.f32 %v810, %v954
  %v1019 = vmul.f32 %v811, %v954
  %v1020 = vld [vmem:[%s4] sm:$0x1]
  %v1022 = vlaneseq
  %v1023 = vshrl.u32 %v1022, 7
  %v1024 = vsub.s32 0, %v1023
  %v1025 = vrot.slane %v1020, %v1024
  %v1027 = vadd.f32 %v956, %v1025
  %v1028 = vadd.f32 %v957, %v1025
  %v1029 = vadd.f32 %v958, %v1025
  %v1030 = vadd.f32 %v959, %v1025
  %v1031 = vadd.f32 %v960, %v1025
  %v1032 = vadd.f32 %v961, %v1025
  %v1033 = vadd.f32 %v962, %v1025
  %v1034 = vadd.f32 %v963, %v1025
  %v1035 = vadd.f32 %v964, %v1025
  %v1036 = vadd.f32 %v965, %v1025
  %v1037 = vadd.f32 %v966, %v1025
  %v1038 = vadd.f32 %v967, %v1025
  %v1039 = vadd.f32 %v968, %v1025
  %v1040 = vadd.f32 %v969, %v1025
  %v1041 = vadd.f32 %v970, %v1025
  %v1042 = vadd.f32 %v971, %v1025
  %v1043 = vadd.f32 %v972, %v1025
  %v1044 = vadd.f32 %v973, %v1025
  %v1045 = vadd.f32 %v974, %v1025
  %v1046 = vadd.f32 %v975, %v1025
  %v1047 = vadd.f32 %v976, %v1025
  %v1048 = vadd.f32 %v977, %v1025
  %v1049 = vadd.f32 %v978, %v1025
  %v1050 = vadd.f32 %v979, %v1025
  %v1051 = vadd.f32 %v980, %v1025
  %v1052 = vadd.f32 %v981, %v1025
  %v1053 = vadd.f32 %v982, %v1025
  %v1054 = vadd.f32 %v983, %v1025
  %v1055 = vadd.f32 %v984, %v1025
  %v1056 = vadd.f32 %v985, %v1025
  %v1057 = vadd.f32 %v986, %v1025
  %v1058 = vadd.f32 %v987, %v1025
  %v1059 = vadd.f32 %v988, %v1025
  %v1060 = vadd.f32 %v989, %v1025
  %v1061 = vadd.f32 %v990, %v1025
  %v1062 = vadd.f32 %v991, %v1025
  %v1063 = vadd.f32 %v992, %v1025
  %v1064 = vadd.f32 %v993, %v1025
  %v1065 = vadd.f32 %v994, %v1025
  %v1066 = vadd.f32 %v995, %v1025
  %v1067 = vadd.f32 %v996, %v1025
  %v1068 = vadd.f32 %v997, %v1025
  %v1069 = vadd.f32 %v998, %v1025
  %v1070 = vadd.f32 %v999, %v1025
  %v1071 = vadd.f32 %v1000, %v1025
  %v1072 = vadd.f32 %v1001, %v1025
  %v1073 = vadd.f32 %v1002, %v1025
  %v1074 = vadd.f32 %v1003, %v1025
  %v1075 = vadd.f32 %v1004, %v1025
  %v1076 = vadd.f32 %v1005, %v1025
  %v1077 = vadd.f32 %v1006, %v1025
  %v1078 = vadd.f32 %v1007, %v1025
  %v1079 = vadd.f32 %v1008, %v1025
  %v1080 = vadd.f32 %v1009, %v1025
  %v1081 = vadd.f32 %v1010, %v1025
  %v1082 = vadd.f32 %v1011, %v1025
  %v1083 = vadd.f32 %v1012, %v1025
  %v1084 = vadd.f32 %v1013, %v1025
  %v1085 = vadd.f32 %v1014, %v1025
  %v1086 = vadd.f32 %v1015, %v1025
  %v1087 = vadd.f32 %v1016, %v1025
  %v1088 = vadd.f32 %v1017, %v1025
  %v1089 = vadd.f32 %v1018, %v1025
  %v1090 = vadd.f32 %v1019, %v1025
  %v1091 = vmax.f32 %v1027, 0.0
  %v1092 = vmax.f32 %v1028, 0.0
  %v1093 = vmax.f32 %v1029, 0.0
  %v1094 = vmax.f32 %v1030, 0.0
  %v1095 = vmax.f32 %v1031, 0.0
  %v1096 = vmax.f32 %v1032, 0.0
  %v1097 = vmax.f32 %v1033, 0.0
  %v1098 = vmax.f32 %v1034, 0.0
  %v1099 = vmax.f32 %v1035, 0.0
  %v1100 = vmax.f32 %v1036, 0.0
  %v1101 = vmax.f32 %v1037, 0.0
  %v1102 = vmax.f32 %v1038, 0.0
  %v1103 = vmax.f32 %v1039, 0.0
  %v1104 = vmax.f32 %v1040, 0.0
  %v1105 = vmax.f32 %v1041, 0.0
  %v1106 = vmax.f32 %v1042, 0.0
  %v1107 = vmax.f32 %v1043, 0.0
  %v1108 = vmax.f32 %v1044, 0.0
  %v1109 = vmax.f32 %v1045, 0.0
  %v1110 = vmax.f32 %v1046, 0.0
  %v1111 = vmax.f32 %v1047, 0.0
  %v1112 = vmax.f32 %v1048, 0.0
  %v1113 = vmax.f32 %v1049, 0.0
  %v1114 = vmax.f32 %v1050, 0.0
  %v1115 = vmax.f32 %v1051, 0.0
  %v1116 = vmax.f32 %v1052, 0.0
  %v1117 = vmax.f32 %v1053, 0.0
  %v1118 = vmax.f32 %v1054, 0.0
  %v1119 = vmax.f32 %v1055, 0.0
  %v1120 = vmax.f32 %v1056, 0.0
  %v1121 = vmax.f32 %v1057, 0.0
  %v1122 = vmax.f32 %v1058, 0.0
  %v1123 = vmax.f32 %v1059, 0.0
  %v1124 = vmax.f32 %v1060, 0.0
  %v1125 = vmax.f32 %v1061, 0.0
  %v1126 = vmax.f32 %v1062, 0.0
  %v1127 = vmax.f32 %v1063, 0.0
  %v1128 = vmax.f32 %v1064, 0.0
  %v1129 = vmax.f32 %v1065, 0.0
  %v1130 = vmax.f32 %v1066, 0.0
  %v1131 = vmax.f32 %v1067, 0.0
  %v1132 = vmax.f32 %v1068, 0.0
  %v1133 = vmax.f32 %v1069, 0.0
  %v1134 = vmax.f32 %v1070, 0.0
  %v1135 = vmax.f32 %v1071, 0.0
  %v1136 = vmax.f32 %v1072, 0.0
  %v1137 = vmax.f32 %v1073, 0.0
  %v1138 = vmax.f32 %v1074, 0.0
  %v1139 = vmax.f32 %v1075, 0.0
  %v1140 = vmax.f32 %v1076, 0.0
  %v1141 = vmax.f32 %v1077, 0.0
  %v1142 = vmax.f32 %v1078, 0.0
  %v1143 = vmax.f32 %v1079, 0.0
  %v1144 = vmax.f32 %v1080, 0.0
  %v1145 = vmax.f32 %v1081, 0.0
  %v1146 = vmax.f32 %v1082, 0.0
  %v1147 = vmax.f32 %v1083, 0.0
  %v1148 = vmax.f32 %v1084, 0.0
  %v1149 = vmax.f32 %v1085, 0.0
  %v1150 = vmax.f32 %v1086, 0.0
  %v1151 = vmax.f32 %v1087, 0.0
  %v1152 = vmax.f32 %v1088, 0.0
  %v1153 = vmax.f32 %v1089, 0.0
  %v1154 = vmax.f32 %v1090, 0.0
  %1155 = vst [vmem:[%s5] sm:$0xff] %v1091
  %1156 = vst [vmem:[%s5 + $0x8] sm:$0xff] %v1092
  %1157 = vst [vmem:[%s5 + $0x10] sm:$0xff] %v1093
  %1158 = vst [vmem:[%s5 + $0x18] sm:$0xff] %v1094
  %1159 = vst [vmem:[%s5 + $0x20] sm:$0xff] %v1095
  %1160 = vst [vmem:[%s5 + $0x28] sm:$0xff] %v1096
  %1161 = vst [vmem:[%s5 + $0x30] sm:$0xff] %v1097
  %1162 = vst [vmem:[%s5 + $0x38] sm:$0xff] %v1098
  %1163 = vst [vmem:[%s5 + $0x40] sm:$0xff] %v1099
  %1164 = vst [vmem:[%s5 + $0x48] sm:$0xff] %v1100
  %1165 = vst [vmem:[%s5 + $0x50] sm:$0xff] %v1101
  %1166 = vst [vmem:[%s5 + $0x58] sm:$0xff] %v1102
  %1167 = vst [vmem:[%s5 + $0x60] sm:$0xff] %v1103
  %1168 = vst [vmem:[%s5 + $0x68] sm:$0xff] %v1104
  %1169 = vst [vmem:[%s5 + $0x70] sm:$0xff] %v1105
  %1170 = vst [vmem:[%s5 + $0x78] sm:$0xff] %v1106
  %1171 = vst [vmem:[%s5 + $0x80] sm:$0xff] %v1107
  %1172 = vst [vmem:[%s5 + $0x88] sm:$0xff] %v1108
  %1173 = vst [vmem:[%s5 + $0x90] sm:$0xff] %v1109
  %1174 = vst [vmem:[%s5 + $0x98] sm:$0xff] %v1110
  %1175 = vst [vmem:[%s5 + $0xa0] sm:$0xff] %v1111
  %1176 = vst [vmem:[%s5 + $0xa8] sm:$0xff] %v1112
  %1177 = vst [vmem:[%s5 + $0xb0] sm:$0xff] %v1113
  %1178 = vst [vmem:[%s5 + $0xb8] sm:$0xff] %v1114
  %1179 = vst [vmem:[%s5 + $0xc0] sm:$0xff] %v1115
  %1180 = vst [vmem:[%s5 + $0xc8] sm:$0xff] %v1116
  %1181 = vst [vmem:[%s5 + $0xd0] sm:$0xff] %v1117
  %1182 = vst [vmem:[%s5 + $0xd8] sm:$0xff] %v1118
  %1183 = vst [vmem:[%s5 + $0xe0] sm:$0xff] %v1119
  %1184 = vst [vmem:[%s5 + $0xe8] sm:$0xff] %v1120
  %1185 = vst [vmem:[%s5 + $0xf0] sm:$0xff] %v1121
  %1186 = vst [vmem:[%s5 + $0xf8] sm:$0xff] %v1122
  %1187 = vst [vmem:[%s5 + $0x100] sm:$0xff] %v1123
  %1188 = vst [vmem:[%s5 + $0x108] sm:$0xff] %v1124
  %1189 = vst [vmem:[%s5 + $0x110] sm:$0xff] %v1125
  %1190 = vst [vmem:[%s5 + $0x118] sm:$0xff] %v1126
  %1191 = vst [vmem:[%s5 + $0x120] sm:$0xff] %v1127
  %1192 = vst [vmem:[%s5 + $0x128] sm:$0xff] %v1128
  %1193 = vst [vmem:[%s5 + $0x130] sm:$0xff] %v1129
  %1194 = vst [vmem:[%s5 + $0x138] sm:$0xff] %v1130
  %1195 = vst [vmem:[%s5 + $0x140] sm:$0xff] %v1131
  %1196 = vst [vmem:[%s5 + $0x148] sm:$0xff] %v1132
  %1197 = vst [vmem:[%s5 + $0x150] sm:$0xff] %v1133
  %1198 = vst [vmem:[%s5 + $0x158] sm:$0xff] %v1134
  %1199 = vst [vmem:[%s5 + $0x160] sm:$0xff] %v1135
  %1200 = vst [vmem:[%s5 + $0x168] sm:$0xff] %v1136
  %1201 = vst [vmem:[%s5 + $0x170] sm:$0xff] %v1137
  %1202 = vst [vmem:[%s5 + $0x178] sm:$0xff] %v1138
  %1203 = vst [vmem:[%s5 + $0x180] sm:$0xff] %v1139
  %1204 = vst [vmem:[%s5 + $0x188] sm:$0xff] %v1140
  %1205 = vst [vmem:[%s5 + $0x190] sm:$0xff] %v1141
  %1206 = vst [vmem:[%s5 + $0x198] sm:$0xff] %v1142
  %1207 = vst [vmem:[%s5 + $0x1a0] sm:$0xff] %v1143
  %1208 = vst [vmem:[%s5 + $0x1a8] sm:$0xff] %v1144
  %1209 = vst [vmem:[%s5 + $0x1b0] sm:$0xff] %v1145
  %1210 = vst [vmem:[%s5 + $0x1b8] sm:$0xff] %v1146
  %1211 = vst [vmem:[%s5 + $0x1c0] sm:$0xff] %v1147
  %1212 = vst [vmem:[%s5 + $0x1c8] sm:$0xff] %v1148
  %1213 = vst [vmem:[%s5 + $0x1d0] sm:$0xff] %v1149
  %1214 = vst [vmem:[%s5 + $0x1d8] sm:$0xff] %v1150
  %1215 = vst [vmem:[%s5 + $0x1e0] sm:$0xff] %v1151
  %1216 = vst [vmem:[%s5 + $0x1e8] sm:$0xff] %v1152
  %1217 = vst [vmem:[%s5 + $0x1f0] sm:$0xff] %v1153
  %1218 = vst [vmem:[%s5 + $0x1f8] sm:$0xff] %v1154
  // Predicated region
  $region22: #{conv2d_bn_act.1} parent=0 // pred_check
    _
  $region23: #{conv2d_bn_act.1} parent=0 // pred_check_branch
    %1220 = sbr.rel (0) target = $region25
  $region24: #{conv2d_bn_act.1} parent=0 // pred_region
    _
  $region25: #{conv2d_bn_act.1} parent=0 // pred_fallthru
    _
  // Predicated region
  $region26: #{conv2d_bn_act.1} parent=0 // pred_check
    _
  $region27: #{conv2d_bn_act.1} parent=0 // pred_check_branch
    %1222 = sbr.rel (0) target = $region29
  $region28: #{conv2d_bn_act.1} parent=0 // pred_region
    _
  $region29: #{conv2d_bn_act.1} parent=0 // pred_fallthru
    _

</llo_original>
